<compile_context>
chip_gen: v5e
topology: v5e:2x2
jax: 0.10.0
libtpu: 0.0.40
codegen_flags: <defaults>
</compile_context>

<pallas_src>
import math
from functools import partial

import jax
import jax.numpy as jnp
from jax.experimental import pallas as pl
from jax.experimental.pallas import tpu as pltpu

EPS = 1e-5
LANE = 128
SUBLANE = 8


def _round_up(x, m):
    return (x + m - 1) // m * m


def _layernorm_f32(resid_f32, gamma_f32, beta_f32, d_actual):
    """LayerNorm over the last axis; padded columns (>= d_actual) are masked out of the stats."""
    d_pad = resid_f32.shape[-1]
    inv_d = jnp.float32(1.0 / d_actual)
    mean = jnp.sum(resid_f32, axis=-1, keepdims=True) * inv_d   # padded cols are zero -> sum ok
    centered = resid_f32 - mean
    if d_pad != d_actual:
        col = jax.lax.broadcasted_iota(jnp.int32, resid_f32.shape, dimension=1)
        centered = jnp.where(col < d_actual, centered, 0.0)
    var = jnp.sum(centered * centered, axis=-1, keepdims=True) * inv_d
    inv = jax.lax.rsqrt(var + EPS)                               # EUP rsqrt: free under mem-bound
    return centered * inv * gamma_f32 + beta_f32


def _final_block_kernel_resid(h_ref, r_ref, g_ref, b_ref, w_ref, bias_ref,
                              out_ref, resid_out_ref, *, d_actual):
    h = h_ref[...].astype(jnp.float32)
    resid = r_ref[...].astype(jnp.float32) + h          # residual + drop_path(hidden), drop_path = id
    normed = _layernorm_f32(resid,
                            g_ref[...].astype(jnp.float32),
                            b_ref[...].astype(jnp.float32),
                            d_actual)
    out = jnp.dot(normed.astype(w_ref.dtype), w_ref[...],
                  preferred_element_type=jnp.float32)
    out = out + bias_ref[...].astype(jnp.float32)
    out_ref[...] = out.astype(out_ref.dtype)
    resid_out_ref[...] = resid.astype(resid_out_ref.dtype)


def _final_block_kernel_noresid(h_ref, g_ref, b_ref, w_ref, bias_ref,
                                out_ref, *, d_actual):
    # residual is None -> residual_out == hidden_states (handled in wrapper, no extra HBM write)
    resid = h_ref[...].astype(jnp.float32)
    normed = _layernorm_f32(resid,
                            g_ref[...].astype(jnp.float32),
                            b_ref[...].astype(jnp.float32),
                            d_actual)
    out = jnp.dot(normed.astype(w_ref.dtype), w_ref[...],
                  preferred_element_type=jnp.float32)
    out = out + bias_ref[...].astype(jnp.float32)
    out_ref[...] = out.astype(out_ref.dtype)


def _choose_row_tile(n_rows, d_pad, d_out_pad, in_bytes, out_bytes, w_bytes,
                     has_residual, max_tile=1024, budget_bytes=24 << 20):
    """Pick the largest row tile (multiple of 8) fitting a conservative VMEM budget,
    then split rows as evenly as possible so row padding waste stays tiny."""
    # weight + params are grid-invariant but still double-buffered by the default pipeline
    fixed = 2 * d_pad * d_out_pad * w_bytes + 4 * 4 * (2 * d_pad + d_out_pad)
    per_row = 2 * d_pad * in_bytes * (2 if has_residual else 1)                 # inputs (dbl-buf)
    per_row += 2 * out_bytes * (d_out_pad + (d_pad if has_residual else 0))     # outputs (dbl-buf)
    avail = max(budget_bytes - fixed, per_row * SUBLANE)
    cap = max(SUBLANE, min(max_tile, (avail // per_row) // SUBLANE * SUBLANE))
    num_tiles = max(1, math.ceil(n_rows / cap))
    row_tile = _round_up(math.ceil(n_rows / num_tiles), SUBLANE)
    return row_tile, num_tiles


def final_block_forward(hidden_states, residual, gamma, beta, w_mixer, b_mixer,
                        *, max_row_tile=1024):
    """hidden_states: (B, L, D); residual: (B, L, D) or None.

    Returns (hidden_out (B, L, D_out), residual_out (B, L, D))."""
    B, L, D = hidden_states.shape
    D_out = w_mixer.shape[1]
    n_rows = B * L
    has_residual = residual is not None
    out_dtype = hidden_states.dtype

    D_pad = _round_up(D, LANE)
    D_out_pad = _round_up(D_out, LANE)

    in_bytes = jnp.dtype(hidden_states.dtype).itemsize
    out_bytes = jnp.dtype(out_dtype).itemsize
    w_bytes = jnp.dtype(w_mixer.dtype).itemsize

    row_tile, num_tiles = _choose_row_tile(
        n_rows, D_pad, D_out_pad, in_bytes, out_bytes, w_bytes, has_residual,
        max_tile=max_row_tile)
    n_rows_pad = row_tile * num_tiles

    def prep_tokens(x):
        x2 = x.reshape(n_rows, D)
        if D_pad != D or n_rows_pad != n_rows:
            x2 = jnp.pad(x2, ((0, n_rows_pad - n_rows), (0, D_pad - D)))
        return x2

    def pad_last(x, target):
        if x.shape[-1] == target:
            return x
        return jnp.pad(x, ((0, 0), (0, target - x.shape[-1])))

    h2 = prep_tokens(hidden_states)
    gamma2 = pad_last(gamma.reshape(1, D), D_pad)
    beta2 = pad_last(beta.reshape(1, D), D_pad)
    w2 = w_mixer
    if D_pad != D or D_out_pad != D_out:
        w2 = jnp.pad(w_mixer, ((0, D_pad - D), (0, D_out_pad - D_out)))
    bias2 = pad_last(b_mixer.reshape(1, D_out), D_out_pad)

    grid = (num_tiles,)
    token_spec = pl.BlockSpec((row_tile, D_pad), lambda i: (i, 0))
    vec_d_spec = pl.BlockSpec((1, D_pad), lambda i: (0, 0))
    w_spec = pl.BlockSpec((D_pad, D_out_pad), lambda i: (0, 0))
    bias_spec = pl.BlockSpec((1, D_out_pad), lambda i: (0, 0))
    out_spec = pl.BlockSpec((row_tile, D_out_pad), lambda i: (i, 0))

    cparams = pltpu.CompilerParams(
        dimension_semantics=("parallel",),
        vmem_limit_bytes=48 << 20,   # explicit; safe on v5e/v6e (128 MiB) and v7x (64 MiB)
    )

    if has_residual:
        r2 = prep_tokens(residual)
        resid_spec = pl.BlockSpec((row_tile, D_pad), lambda i: (i, 0))
        out, resid_out = pl.pallas_call(
            partial(_final_block_kernel_resid, d_actual=D),
            out_shape=(
                jax.ShapeDtypeStruct((n_rows_pad, D_out_pad), out_dtype),
                jax.ShapeDtypeStruct((n_rows_pad, D_pad), out_dtype),
            ),
            grid_spec=pltpu.PrefetchScalarGridSpec(
                num_scalar_prefetch=0,
                grid=grid,
                in_specs=[token_spec, token_spec, vec_d_spec, vec_d_spec,
                          w_spec, bias_spec],
                out_specs=[out_spec, resid_spec],
            ),
            compiler_params=cparams,
        )(h2, r2, gamma2, beta2, w2, bias2)
        if n_rows_pad != n_rows or D_pad != D:
            resid_out = resid_out[:n_rows, :D]
        resid_out = resid_out.reshape(B, L, D)
    else:
        out = pl.pallas_call(
            partial(_final_block_kernel_noresid, d_actual=D),
            out_shape=jax.ShapeDtypeStruct((n_rows_pad, D_out_pad), out_dtype),
            grid_spec=pltpu.PrefetchScalarGridSpec(
                num_scalar_prefetch=0,
                grid=grid,
                in_specs=[token_spec, vec_d_spec, vec_d_spec, w_spec, bias_spec],
                out_specs=out_spec,
            ),
            compiler_params=cparams,
        )(h2, gamma2, beta2, w2, bias2)
        # residual_out == hidden_states; return it directly (no extra HBM read/write).
        resid_out = hidden_states

    if n_rows_pad != n_rows or D_out_pad != D_out:
        out = out[:n_rows, :D_out]
    out = out.reshape(B, L, D_out)
    return out, resid_out


def _reference(hidden, residual, gamma, beta, w, b):
    resid = hidden if residual is None else residual + hidden
    mean = jnp.mean(resid, axis=-1, keepdims=True)
    var = jnp.mean((resid - mean) ** 2, axis=-1, keepdims=True)
    normed = (resid - mean) * jax.lax.rsqrt(var + EPS) * gamma + beta
    return normed @ w + b, resid


if __name__ == "__main__":
    # TODO(synk): mixer_cls is injected externally in the PyTorch code (Mamba SSM with d_state);
    # it is modeled here as a deterministic linear projection d_model -> d_model_out.

    def run_case(B, L, d_model, d_model_out, with_residual, seed):
        key = jax.random.PRNGKey(seed)
        k_h, k_r, k_w = jax.random.split(key, 3)
        hidden = jax.random.normal(k_h, (B, L, d_model), dtype=jnp.float32)
        residual = (jax.random.normal(k_r, (B, L, d_model), dtype=jnp.float32)
                    if with_residual else None)
        gamma = jnp.ones((d_model,), jnp.float32)
        beta = jnp.zeros((d_model,), jnp.float32)
        w_mixer = 0.02 * jax.random.normal(k_w, (d_model, d_model_out), dtype=jnp.float32)
        b_mixer = jnp.zeros((d_model_out,), jnp.float32)

        h_out, r_out = final_block_forward(hidden, residual, gamma, beta, w_mixer, b_mixer)
        h_out = jax.block_until_ready(h_out)
        r_out = jax.block_until_ready(r_out)
        h_ref, r_ref = _reference(hidden, residual, gamma, beta, w_mixer, b_mixer)

        assert h_out.shape == (B, L, d_model_out), h_out.shape
        assert r_out.shape == (B, L, d_model), r_out.shape
        assert jnp.allclose(h_out, h_ref, atol=1e-4, rtol=1e-4)
        assert jnp.allclose(r_out, r_ref, atol=1e-4, rtol=1e-4)

    # Case 1/2: small module-consistent shapes (batch=2, seq=8, d_model=32, d_model_out=64),
    # sub-128 feature dims exercise the lane-padding + masked-LayerNorm path.
    run_case(B=2, L=8, d_model=32, d_model_out=64, with_residual=True, seed=0)
    run_case(B=2, L=8, d_model=32, d_model_out=64, with_residual=False, seed=0)

    # Case 3/4: lane-aligned feature dims and a non-multiple-of-8 token count
    # (exercises the row-padding / even-split tiling path, no assert on divisibility).
    run_case(B=2, L=135, d_model=128, d_model_out=256, with_residual=True, seed=1)
    run_case(B=2, L=135, d_model=128, d_model_out=256, with_residual=False, seed=1)

    print("KERNEL_OK")
</pallas_src>

<mosaic_0001>
module attributes {stable_mosaic.version = 11 : i64} {
  func.func @_final_block_kernel_resid(%arg0: i32, %arg1: memref<16x128xf32, #tpu.memory_space<vmem>>, %arg2: memref<16x128xf32, #tpu.memory_space<vmem>>, %arg3: memref<1x128xf32, #tpu.memory_space<vmem>>, %arg4: memref<1x128xf32, #tpu.memory_space<vmem>>, %arg5: memref<128x128xf32, #tpu.memory_space<vmem>>, %arg6: memref<1x128xf32, #tpu.memory_space<vmem>>, %arg7: memref<16x128xf32, #tpu.memory_space<vmem>>, %arg8: memref<16x128xf32, #tpu.memory_space<vmem>>) attributes {dimension_semantics = [#tpu.dimension_semantics<parallel>], iteration_bounds = array<i64: 1>, scalar_prefetch = 0 : i64, scratch_operands = 0 : i64, tpu.core_type = #tpu.core_type<tc>, window_params = [{transform_indices = @transform_0, window_bounds = array<i64: 16, 128>}, {transform_indices = @transform_1, window_bounds = array<i64: 16, 128>}, {pipeline_mode = #tpu.pipeline_mode<synchronous>, transform_indices = @transform_2, window_bounds = array<i64: 1, 128>}, {pipeline_mode = #tpu.pipeline_mode<synchronous>, transform_indices = @transform_3, window_bounds = array<i64: 1, 128>}, {pipeline_mode = #tpu.pipeline_mode<synchronous>, transform_indices = @transform_4, window_bounds = array<i64: 128, 128>}, {pipeline_mode = #tpu.pipeline_mode<synchronous>, transform_indices = @transform_5, window_bounds = array<i64: 1, 128>}, {transform_indices = @transform_6, window_bounds = array<i64: 16, 128>}, {transform_indices = @transform_7, window_bounds = array<i64: 16, 128>}]} {
    %c0 = arith.constant 0 : index
    %c0_0 = arith.constant 0 : index
    %0 = vector.load %arg1[%c0, %c0_0] : memref<16x128xf32, #tpu.memory_space<vmem>>, vector<16x128xf32>
    %c0_1 = arith.constant 0 : index
    %c0_2 = arith.constant 0 : index
    %1 = vector.load %arg2[%c0_1, %c0_2] : memref<16x128xf32, #tpu.memory_space<vmem>>, vector<16x128xf32>
    %2 = arith.addf %1, %0 : vector<16x128xf32>
    %c0_3 = arith.constant 0 : index
    %c0_4 = arith.constant 0 : index
    %3 = vector.load %arg3[%c0_3, %c0_4] : memref<1x128xf32, #tpu.memory_space<vmem>>, vector<1x128xf32>
    %c0_5 = arith.constant 0 : index
    %c0_6 = arith.constant 0 : index
    %4 = vector.load %arg4[%c0_5, %c0_6] : memref<1x128xf32, #tpu.memory_space<vmem>>, vector<1x128xf32>
    %cst = arith.constant dense<0.000000e+00> : vector<16xf32>
    %5 = vector.multi_reduction <add>, %2, %cst [1] : vector<16x128xf32> to vector<16xf32>
    %6 = vector.shape_cast %5 : vector<16xf32> to vector<16x1xf32>
    %cst_7 = arith.constant 3.125000e-02 : f32
    %7 = vector.broadcast %cst_7 : f32 to vector<16x1xf32>
    %8 = arith.mulf %6, %7 : vector<16x1xf32>
    %9 = vector.broadcast %8 : vector<16x1xf32> to vector<16x128xf32>
    %10 = arith.subf %2, %9 : vector<16x128xf32>
    %11 = tpu.iota {dimensions = array<i32: 1>} : vector<16x128xi32>
    %c32_i32 = arith.constant 32 : i32
    %12 = vector.broadcast %c32_i32 : i32 to vector<16x128xi32>
    %13 = arith.cmpi slt, %11, %12 : vector<16x128xi32>
    %cst_8 = arith.constant 0.000000e+00 : f32
    %14 = vector.broadcast %cst_8 : f32 to vector<16x128xf32>
    %15 = arith.select %13, %10, %14 : vector<16x128xi1>, vector<16x128xf32>
    %16 = arith.mulf %15, %15 : vector<16x128xf32>
    %cst_9 = arith.constant dense<0.000000e+00> : vector<16xf32>
    %17 = vector.multi_reduction <add>, %16, %cst_9 [1] : vector<16x128xf32> to vector<16xf32>
    %18 = vector.shape_cast %17 : vector<16xf32> to vector<16x1xf32>
    %cst_10 = arith.constant 3.125000e-02 : f32
    %19 = vector.broadcast %cst_10 : f32 to vector<16x1xf32>
    %20 = arith.mulf %18, %19 : vector<16x1xf32>
    %cst_11 = arith.constant 9.99999974E-6 : f32
    %21 = vector.broadcast %cst_11 : f32 to vector<16x1xf32>
    %22 = arith.addf %20, %21 : vector<16x1xf32>
    %23 = math.rsqrt %22 : vector<16x1xf32>
    %24 = vector.broadcast %23 : vector<16x1xf32> to vector<16x128xf32>
    %25 = arith.mulf %15, %24 : vector<16x128xf32>
    %26 = vector.broadcast %3 : vector<1x128xf32> to vector<16x128xf32>
    %27 = arith.mulf %25, %26 : vector<16x128xf32>
    %28 = vector.broadcast %4 : vector<1x128xf32> to vector<16x128xf32>
    %29 = arith.addf %27, %28 : vector<16x128xf32>
    %c0_12 = arith.constant 0 : index
    %c0_13 = arith.constant 0 : index
    %30 = vector.load %arg5[%c0_12, %c0_13] : memref<128x128xf32, #tpu.memory_space<vmem>>, vector<128x128xf32>
    %cst_14 = arith.constant dense<0.000000e+00> : vector<16x128xf32>
    %31 = tpu.matmul %29, %30, %cst_14 {dimension_numbers = #tpu.dot_dimension_numbers<[1], [0], [0], [1], [0, 0, 1, 1], [], []>} : vector<16x128xf32>, vector<128x128xf32>, vector<16x128xf32> -> vector<16x128xf32>
    %c0_15 = arith.constant 0 : index
    %c0_16 = arith.constant 0 : index
    %32 = vector.load %arg6[%c0_15, %c0_16] : memref<1x128xf32, #tpu.memory_space<vmem>>, vector<1x128xf32>
    %33 = vector.broadcast %32 : vector<1x128xf32> to vector<16x128xf32>
    %34 = arith.addf %31, %33 : vector<16x128xf32>
    %c0_17 = arith.constant 0 : index
    %c0_18 = arith.constant 0 : index
    %35 = vector.load %arg7[%c0_17, %c0_18] : memref<16x128xf32, #tpu.memory_space<vmem>>, vector<16x128xf32>
    tpu.vector_store %arg7[%c0_17, %c0_18], %34 {strides = array<i32>} : memref<16x128xf32, #tpu.memory_space<vmem>>, vector<16x128xf32>,
    %c0_19 = arith.constant 0 : index
    %c0_20 = arith.constant 0 : index
    %36 = vector.load %arg8[%c0_19, %c0_20] : memref<16x128xf32, #tpu.memory_space<vmem>>, vector<16x128xf32>
    tpu.vector_store %arg8[%c0_19, %c0_20], %2 {strides = array<i32>} : memref<16x128xf32, #tpu.memory_space<vmem>>, vector<16x128xf32>,
    return
  }
  func.func @transform_0(%arg0: i32) -> (i32, i32) {
    %c0_i32 = arith.constant 0 : i32
    %c0_i32_0 = arith.constant 0 : i32
    return %arg0, %c0_i32 : i32, i32
  }
  func.func @transform_1(%arg0: i32) -> (i32, i32) {
    %c0_i32 = arith.constant 0 : i32
    %c0_i32_0 = arith.constant 0 : i32
    return %arg0, %c0_i32 : i32, i32
  }
  func.func @transform_2(%arg0: i32) -> (i32, i32) {
    %c0_i32 = arith.constant 0 : i32
    %c0_i32_0 = arith.constant 0 : i32
    %c0_i32_1 = arith.constant 0 : i32
    return %c0_i32, %c0_i32_0 : i32, i32
  }
  func.func @transform_3(%arg0: i32) -> (i32, i32) {
    %c0_i32 = arith.constant 0 : i32
    %c0_i32_0 = arith.constant 0 : i32
    %c0_i32_1 = arith.constant 0 : i32
    return %c0_i32, %c0_i32_0 : i32, i32
  }
  func.func @transform_4(%arg0: i32) -> (i32, i32) {
    %c0_i32 = arith.constant 0 : i32
    %c0_i32_0 = arith.constant 0 : i32
    %c0_i32_1 = arith.constant 0 : i32
    return %c0_i32, %c0_i32_0 : i32, i32
  }
  func.func @transform_5(%arg0: i32) -> (i32, i32) {
    %c0_i32 = arith.constant 0 : i32
    %c0_i32_0 = arith.constant 0 : i32
    %c0_i32_1 = arith.constant 0 : i32
    return %c0_i32, %c0_i32_0 : i32, i32
  }
  func.func @transform_6(%arg0: i32) -> (i32, i32) {
    %c0_i32 = arith.constant 0 : i32
    %c0_i32_0 = arith.constant 0 : i32
    return %arg0, %c0_i32 : i32, i32
  }
  func.func @transform_7(%arg0: i32) -> (i32, i32) {
    %c0_i32 = arith.constant 0 : i32
    %c0_i32_0 = arith.constant 0 : i32
    return %arg0, %c0_i32 : i32, i32
  }
}

</mosaic_0001>

<llo_original>
// kernel: tpu_custom_call.1
$region0: #{tpu_custom_call.1}
  #allocation0 [shape = 'u32[]', space=smem, size = 0x4, offset = 0x4, fixed_abs, tag = 'smem constant byte address 0x4 - core index']
  #allocation1 [shape = 'u32[72,128]{1,0:T(1,128)}', space=vmem, size = 0x9000, scoped, tag = 'internal scratch']
  %s0 = inlined_call_operand.hbm [shape: f32[16,128], index: 0, kind: input, shape index: {}]
  %s1 = inlined_call_operand.hbm [shape: f32[16,128], index: 1, kind: input, shape index: {}]
  %s2 = inlined_call_operand.vmem [shape: f32[1,128], index: 2, kind: input, shape index: {}]
  %s3 = inlined_call_operand.vmem [shape: f32[1,128], index: 3, kind: input, shape index: {}]
  %s4 = inlined_call_operand.hbm [shape: f32[128,128], index: 4, kind: input, shape index: {}]
  %s5 = inlined_call_operand.vmem [shape: f32[1,128], index: 5, kind: input, shape index: {}]
  %s6 = inlined_call_operand.hbm [shape: f32[16,128], index: 6, kind: output, shape index: {0}]
  %s7 = inlined_call_operand.hbm [shape: f32[16,128], index: 7, kind: output, shape index: {1}]
  %8 = xla_tuple %s6, %s7
  %s9 = sld [smem:[#allocation0]]
  $region54: #{tpu_custom_call.1} parent=0
    _
  %s11 = ssub.s32 1, %s9
  %s12 = scalar_select 0, %s11, %s9
  $region1: #{tpu_custom_call.1} parent=0
    #allocation2 [shape = 'u8[8192]{0}', space=vmem, size = 0x2000, scoped, tag = 'input window, operand 0, single buffered']
    #allocation3 [shape = 's32[1]{0}', space=sflag, size = 0x4, scoped, tag = 'scoped memory for tpu_custom_call.1']
    #allocation4 [shape = 's32[1]{0}', space=sflag, size = 0x4, scoped, tag = 'scoped memory for tpu_custom_call.1']
    #allocation5 [shape = 'u8[8192]{0}', space=vmem, size = 0x2000, scoped, tag = 'input window, operand 1, single buffered']
    #allocation6 [shape = 's32[1]{0}', space=sflag, size = 0x4, scoped, tag = 'scoped memory for tpu_custom_call.1']
    #allocation7 [shape = 'u8[65536]{0}', space=vmem, size = 0x10000, scoped, tag = 'input window, operand 4, single buffered']
    #allocation8 [shape = 'u8[8192]{0}', space=vmem, size = 0x2000, scoped, tag = 'output window, operand 0, single buffered']
    #allocation9 [shape = 'u8[8192]{0}', space=vmem, size = 0x2000, scoped, tag = 'output window, operand 1, single buffered']
    #allocation10 [shape = 's32[1]{0}', space=sflag, size = 0x4, scoped, tag = 'scoped memory for tpu_custom_call.1']
    %13 = vsyncpa [#allocation3], 0
    %14 = vsyncpa [#allocation6], 0
    %15 = vsyncpa [#allocation4], 0
    %16 = vsyncpa [#allocation10], 0
    // Predicated region
    $region2: #{tpu_custom_call.1} parent=1 // pred_check
      _
    $region3: #{tpu_custom_call.1} parent=1 // pred_check_branch
      %18 = sbr.rel (0) target = $region5
    $region4: #{tpu_custom_call.1} parent=1 // pred_region
      %20 = vsyncadd [#allocation3], 0
      %s21 = sshll.u32 %s0, 4
      %s22 = int_to_ptr.hbm [resolvable:$true] %s21
      %s23 = sshll.u32 [#allocation2], 4
      %s24 = int_to_ptr.vmem [resolvable:$true] %s23
      %29 = dma.hbm_to_vmem [thread:$0]  %s22, 256, %s24, [#allocation3], 128, 128, 8
    $region5: #{tpu_custom_call.1} parent=1 // pred_fallthru
      _
    // Predicated region
    $region6: #{tpu_custom_call.1} parent=1 // pred_check
      _
    $region7: #{tpu_custom_call.1} parent=1 // pred_check_branch
      %31 = sbr.rel (0) target = $region9
    $region8: #{tpu_custom_call.1} parent=1 // pred_region
      %33 = vsyncadd [#allocation6], 0
      %s34 = sshll.u32 %s1, 4
      %s35 = int_to_ptr.hbm [resolvable:$true] %s34
      %s36 = sshll.u32 [#allocation5], 4
      %s37 = int_to_ptr.vmem [resolvable:$true] %s36
      %42 = dma.hbm_to_vmem [thread:$0]  %s35, 256, %s37, [#allocation6], 128, 128, 8
    $region9: #{tpu_custom_call.1} parent=1 // pred_fallthru
      _
    // Predicated region
    $region10: #{tpu_custom_call.1} parent=1 // pred_check
      _
    $region11: #{tpu_custom_call.1} parent=1 // pred_check_branch
      %44 = sbr.rel (0) target = $region13
    $region12: #{tpu_custom_call.1} parent=1 // pred_region
      _
    $region13: #{tpu_custom_call.1} parent=1 // pred_fallthru
      _
    // Predicated region
    $region14: #{tpu_custom_call.1} parent=1 // pred_check
      _
    $region15: #{tpu_custom_call.1} parent=1 // pred_check_branch
      %46 = sbr.rel (0) target = $region17
    $region16: #{tpu_custom_call.1} parent=1 // pred_region
      _
    $region17: #{tpu_custom_call.1} parent=1 // pred_fallthru
      _
    // Predicated region
    $region18: #{tpu_custom_call.1} parent=1 // pred_check
      _
    $region19: #{tpu_custom_call.1} parent=1 // pred_check_branch
      %48 = sbr.rel (0) target = $region21
    $region20: #{tpu_custom_call.1} parent=1 // pred_region
      %50 = vsyncadd [#allocation6], 0
      %s51 = sshll.u32 %s4, 4
      %s52 = int_to_ptr.hbm [resolvable:$true] %s51
      %s53 = sshll.u32 [#allocation7], 4
      %s54 = int_to_ptr.vmem [resolvable:$true] %s53
      %59 = dma.hbm_to_vmem [thread:$0]  %s52, 2048, %s54, [#allocation6], 128, 128, 8
    $region21: #{tpu_custom_call.1} parent=1 // pred_fallthru
      _
    // Predicated region
    $region22: #{tpu_custom_call.1} parent=1 // pred_check
      _
    $region23: #{tpu_custom_call.1} parent=1 // pred_check_branch
      %61 = sbr.rel (0) target = $region25
    $region24: #{tpu_custom_call.1} parent=1 // pred_region
      _
    $region25: #{tpu_custom_call.1} parent=1 // pred_fallthru
      _
    // Predicated region
    $region26: #{tpu_custom_call.1} parent=1 // pred_check
      _
    $region27: #{tpu_custom_call.1} parent=1 // pred_check_branch
      %63 = sbr.rel (0) target = $region29
    $region28: #{tpu_custom_call.1} parent=1 // pred_region
      %65 = dma.done [#allocation3], 256
    $region29: #{tpu_custom_call.1} parent=1 // pred_fallthru
      _
    // Predicated region
    $region30: #{tpu_custom_call.1} parent=1 // pred_check
      _
    $region31: #{tpu_custom_call.1} parent=1 // pred_check_branch
      %67 = sbr.rel (0) target = $region33
    $region32: #{tpu_custom_call.1} parent=1 // pred_region
      %69 = dma.done [#allocation6], 256
    $region33: #{tpu_custom_call.1} parent=1 // pred_fallthru
      _
    // Predicated region
    $region34: #{tpu_custom_call.1} parent=1 // pred_check
      _
    $region35: #{tpu_custom_call.1} parent=1 // pred_check_branch
      %71 = sbr.rel (0) target = $region37
    $region36: #{tpu_custom_call.1} parent=1 // pred_region
      %73 = dma.done [#allocation6], 2048
    $region37: #{tpu_custom_call.1} parent=1 // pred_fallthru
      _
    %v74 = vld [vmem:[#allocation2] sm:$0xff]
    %v75 = vld [vmem:[#allocation2 + $0x8] sm:$0xff]
    %v76 = vld [vmem:[#allocation5] sm:$0xff]
    %v77 = vld [vmem:[#allocation5 + $0x8] sm:$0xff]
    %v78 = vadd.f32 %v76, %v74
    %v79 = vadd.f32 %v77, %v75
    %v80 = vld [vmem:[%s2] sm:$0x1]
    %v81 = vld [vmem:[%s3] sm:$0x1]
    %82 = vadd.xlane.f32.xlu0 %v78
    %v83 = vpop.xlane.xlu0 %82
    %84 = vadd.xlane.f32.xlu0 %v79
    %v85 = vpop.xlane.xlu0 %84
    %v86 = vmul.f32 %v83, 0.03125
    %v87 = vmul.f32 %v85, 0.03125
    %v88 = vsub.f32 %v78, %v86
    %v89 = vsub.f32 %v79, %v87
    %v90 = vlaneseq
    %v91 = vand.u32 %v90, 127
    %vm92 = vcmp.lt.s32.totalorder %v91, 32
    %v93 = vsel %vm92, %v88, 0.0
    %v94 = vsel %vm92, %v89, 0.0
    %v95 = vmul.f32 %v93, %v93
    %v96 = vmul.f32 %v94, %v94
    %97 = vadd.xlane.f32.xlu0 %v95
    %v98 = vpop.xlane.xlu0 %97
    %99 = vadd.xlane.f32.xlu0 %v96
    %v100 = vpop.xlane.xlu0 %99
    %v101 = vmul.f32 %v98, 0.03125
    %v102 = vmul.f32 %v100, 0.03125
    %v103 = vadd.f32 %v101, 1e-05
    %v104 = vadd.f32 %v102, 1e-05
    %v105 = vrsqrt.pop %v103
    %v106 = vmul.f32 %v105, %v103
    %v107 = vmul.f32 %v106, %v105
    %v108 = vmul.f32 0.5, %v107
    %v109 = vsub.f32 1.5, %v108
    %v110 = vmul.f32 %v105, %v109
    %vm111 = vweird.f32 %v103
    %vm112 = vweird.f32 %v105
    %vm113 = vmor %vm111, %vm112
    %v114 = vsel %vm113, %v105, %v110
    %v115 = vrsqrt.pop %v104
    %v116 = vmul.f32 %v115, %v104
    %v117 = vmul.f32 %v116, %v115
    %v118 = vmul.f32 0.5, %v117
    %v119 = vsub.f32 1.5, %v118
    %v120 = vmul.f32 %v115, %v119
    %vm121 = vweird.f32 %v104
    %vm122 = vweird.f32 %v115
    %vm123 = vmor %vm121, %vm122
    %v124 = vsel %vm123, %v115, %v120
    %v125 = vmul.f32 %v93, %v114
    %v126 = vmul.f32 %v94, %v124
    %v128 = vperm.slane %v80, 0
    %v130 = vmul.f32 %v125, %v128
    %v131 = vmul.f32 %v126, %v128
    %v133 = vperm.slane %v81, 0
    %v135 = vadd.f32 %v130, %v133
    %v136 = vadd.f32 %v131, %v133
    %v137 = vld [vmem:[#allocation7] sm:$0xff]
    %v138 = vld [vmem:[#allocation7 + $0x8] sm:$0xff]
    %v139 = vld [vmem:[#allocation7 + $0x10] sm:$0xff]
    %v140 = vld [vmem:[#allocation7 + $0x18] sm:$0xff]
    %v141 = vld [vmem:[#allocation7 + $0x20] sm:$0xff]
    %v142 = vld [vmem:[#allocation7 + $0x28] sm:$0xff]
    %v143 = vld [vmem:[#allocation7 + $0x30] sm:$0xff]
    %v144 = vld [vmem:[#allocation7 + $0x38] sm:$0xff]
    %v145 = vld [vmem:[#allocation7 + $0x40] sm:$0xff]
    %v146 = vld [vmem:[#allocation7 + $0x48] sm:$0xff]
    %v147 = vld [vmem:[#allocation7 + $0x50] sm:$0xff]
    %v148 = vld [vmem:[#allocation7 + $0x58] sm:$0xff]
    %v149 = vld [vmem:[#allocation7 + $0x60] sm:$0xff]
    %v150 = vld [vmem:[#allocation7 + $0x68] sm:$0xff]
    %v151 = vld [vmem:[#allocation7 + $0x70] sm:$0xff]
    %v152 = vld [vmem:[#allocation7 + $0x78] sm:$0xff]
    %v153 = vld [vmem:[%s5] sm:$0x1]
    %v155 = vperm.slane %v153, 0
    %157 = vmatpush.msra.mxu0 %v152
    %158 = vmatpush.msra.mxu0 %v151
    %159 = vmatpush.msra.mxu0 %v150
    %160 = vmatpush.msra.mxu0 %v149
    %161 = vmatpush.msra.mxu0 %v148
    %162 = vmatpush.msra.mxu0 %v147
    %163 = vmatpush.msra.mxu0 %v146
    %164 = vmatpush.msra.mxu0 %v145
    %165 = vmatpush.msra.mxu0 %v144
    %166 = vmatpush.msra.mxu0 %v143
    %167 = vmatpush.msra.mxu0 %v142
    %168 = vmatpush.msra.mxu0 %v141
    %169 = vmatpush.msra.mxu0 %v140
    %170 = vmatpush.msra.mxu0 %v139
    %171 = vmatpush.msra.mxu0 %v138
    %172 = vmatpush.msra.mxu0 %v137
    %173 = vmatmul.f32.gmra.mxu0 %v135
    %v174 = vpop.f32.mrf.mxu0
    %v175 = vadd.f32 %v155, %v174
    %176 = vmatmul.f32.gmra.mxu0 %v136
    %v177 = vpop.f32.mrf.mxu0
    %v178 = vadd.f32 %v155, %v177
    %179 = vdwg.mxu0
    %180 = vst [vmem:[#allocation8] sm:$0xff] %v175
    %181 = vst [vmem:[#allocation8 + $0x8] sm:$0xff] %v178
    %182 = vst [vmem:[#allocation9] sm:$0xff] %v78
    %183 = vst [vmem:[#allocation9 + $0x8] sm:$0xff] %v79
    // Predicated region
    $region38: #{tpu_custom_call.1} parent=1 // pred_check
      _
    $region39: #{tpu_custom_call.1} parent=1 // pred_check_branch
      %185 = sbr.rel (0) target = $region41
    $region40: #{tpu_custom_call.1} parent=1 // pred_region
      %187 = vsyncadd [#allocation4], 0
      %s188 = sshll.u32 [#allocation8], 4
      %s189 = int_to_ptr.vmem [resolvable:$true] %s188
      %s190 = sshll.u32 %s6, 4
      %s191 = int_to_ptr.hbm [resolvable:$true] %s190
      %196 = dma.vmem_to_hbm [thread:$0]  %s189, 256, %s191, [#allocation4], 128, 128, 8
    $region41: #{tpu_custom_call.1} parent=1 // pred_fallthru
      _
    // Predicated region
    $region42: #{tpu_custom_call.1} parent=1 // pred_check
      _
    $region43: #{tpu_custom_call.1} parent=1 // pred_check_branch
      %198 = sbr.rel (0) target = $region45
    $region44: #{tpu_custom_call.1} parent=1 // pred_region
      %200 = vsyncadd [#allocation10], 0
      %s201 = sshll.u32 [#allocation9], 4
      %s202 = int_to_ptr.vmem [resolvable:$true] %s201
      %s203 = sshll.u32 %s7, 4
      %s204 = int_to_ptr.hbm [resolvable:$true] %s203
      %209 = dma.vmem_to_hbm [thread:$0]  %s202, 256, %s204, [#allocation10], 128, 128, 8
    $region45: #{tpu_custom_call.1} parent=1 // pred_fallthru
      _
    // Predicated region
    $region46: #{tpu_custom_call.1} parent=1 // pred_check
      _
    $region47: #{tpu_custom_call.1} parent=1 // pred_check_branch
      %211 = sbr.rel (0) target = $region49
    $region48: #{tpu_custom_call.1} parent=1 // pred_region
      %213 = dma.done [#allocation4], 256
    $region49: #{tpu_custom_call.1} parent=1 // pred_fallthru
      _
    // Predicated region
    $region50: #{tpu_custom_call.1} parent=1 // pred_check
      _
    $region51: #{tpu_custom_call.1} parent=1 // pred_check_branch
      %215 = sbr.rel (0) target = $region53
    $region52: #{tpu_custom_call.1} parent=1 // pred_region
      %217 = dma.done [#allocation10], 256
    $region53: #{tpu_custom_call.1} parent=1 // pred_fallthru
      _
    %218 = vsyncpa [#allocation3], 1
    %219 = vsyncpa [#allocation6], 1
    %220 = vsyncpa [#allocation4], 1
    %221 = vsyncpa [#allocation10], 1

</llo_original>
